<compile_context>
chip_gen: v7x
topology: tpu7x:2x2x1
jax: 0.10.0
libtpu: 0.0.40
codegen_flags: <defaults>
</compile_context>

<pallas_src>
import functools

import jax
import jax.numpy as jnp
from jax import lax
from jax.experimental import pallas as pl
from jax.experimental.pallas import tpu as pltpu


def _round_up(x, m):
    return ((x + m - 1) // m) * m


def _pick_tile(n_pad):
    # n_pad is always a multiple of 128; prefer larger tiles (better roofline).
    for t in (512, 256, 128):
        if n_pad % t == 0:
            return t
    return n_pad


# --------------------------------------------------------------------------
# Kernel 1: H = relu(A_hat @ XW1 + b1), tiled over (row tiles, col tiles).
# --------------------------------------------------------------------------
def _agg_relu_kernel(a_ref, xw_ref, b_ref, h_ref, acc_ref):
    k = pl.program_id(1)

    @pl.when(k == 0)
    def _():
        acc_ref[...] = jnp.zeros_like(acc_ref)

    acc_ref[...] += jnp.dot(a_ref[...], xw_ref[...],
                            preferred_element_type=jnp.float32)

    @pl.when(k == pl.num_programs(1) - 1)
    def _():
        h = acc_ref[...] + b_ref[...]
        h_ref[...] = jnp.maximum(h, 0.0).astype(h_ref.dtype)


# --------------------------------------------------------------------------
# Kernel 2: out = A_hat @ HW2 + b2, logp = log_softmax(out) over real columns.
# --------------------------------------------------------------------------
def _agg_logsoftmax_kernel(a_ref, hw_ref, b_ref, logp_ref, out_ref, acc_ref,
                           *, out_dim):
    k = pl.program_id(1)

    @pl.when(k == 0)
    def _():
        acc_ref[...] = jnp.zeros_like(acc_ref)

    acc_ref[...] += jnp.dot(a_ref[...], hw_ref[...],
                            preferred_element_type=jnp.float32)

    @pl.when(k == pl.num_programs(1) - 1)
    def _():
        out = acc_ref[...] + b_ref[...]
        out_ref[...] = out
        # log_softmax over the feature axis, masking padded lanes.
        col = lax.broadcasted_iota(jnp.int32, out.shape, 1)
        valid = col < out_dim
        masked = jnp.where(valid, out, -jnp.inf)
        m = jnp.max(masked, axis=1, keepdims=True)
        s = masked - m
        e = jnp.where(valid, jnp.exp(s), 0.0)
        lse = jnp.log(jnp.sum(e, axis=1, keepdims=True))
        logp_ref[...] = s - lse


@jax.jit
def gcn_forward(a_hat, x, w1, b1, w2, b2):
    n = x.shape[0]
    hidden_dim = w1.shape[1]
    out_dim = w2.shape[1]

    n_pad = _round_up(n, 128)
    tm = _pick_tile(n_pad)
    tk = tm
    h_pad = _round_up(hidden_dim, 128)
    o_pad = _round_up(out_dim, 128)

    # Padded bf16 adjacency: halves HBM traffic for the dominant operand.
    a_p = jnp.zeros((n_pad, n_pad), jnp.bfloat16)
    a_p = a_p.at[:n, :n].set(a_hat.astype(jnp.bfloat16))

    # Hoisted projection X @ W1 (tiny; done in XLA), padded + cast to bf16.
    w1_p = jnp.zeros((w1.shape[0], h_pad), jnp.float32).at[:, :hidden_dim].set(w1)
    xw1 = jnp.zeros((n_pad, h_pad), jnp.float32).at[:n].set(jnp.dot(x, w1_p))
    xw1 = xw1.astype(jnp.bfloat16)
    b1_p = jnp.zeros((1, h_pad), jnp.float32).at[:, :hidden_dim].set(
        b1.reshape(1, -1))

    grid = (n_pad // tm, n_pad // tk)
    cp = pltpu.CompilerParams(
        # Row tiles independent (megacore-shardable on v7x); reduction axis
        # over A columns is a carried accumulation.
        dimension_semantics=("parallel", "arbitrary"),
        # Headroom for 512-wide tiles; stays under v7x's 64 MiB VMEM/TC.
        vmem_limit_bytes=48 * 1024 * 1024,
    )

    # ---- Layer 1: H = relu(A @ XW1 + b1) ----
    h = pl.pallas_call(
        _agg_relu_kernel,
        out_shape=jax.ShapeDtypeStruct((n_pad, h_pad), jnp.bfloat16),
        grid=grid,
        in_specs=[
            pl.BlockSpec((tm, tk), lambda i, k: (i, k)),       # A tile
            pl.BlockSpec((tk, h_pad), lambda i, k: (k, 0)),    # XW1 tile
            pl.BlockSpec((1, h_pad), lambda i, k: (0, 0)),     # b1
        ],
        out_specs=pl.BlockSpec((tm, h_pad), lambda i, k: (i, 0)),
        scratch_shapes=[pltpu.VMEM((tm, h_pad), jnp.float32)],
        compiler_params=cp,
    )(a_p, xw1, b1_p)

    # Hoisted projection H @ W2 (tiny; done in XLA), padded + cast to bf16.
    w2_p = jnp.zeros((h_pad, o_pad), jnp.float32)
    w2_p = w2_p.at[:hidden_dim, :out_dim].set(w2)
    hw2 = jnp.dot(h.astype(jnp.float32), w2_p).astype(jnp.bfloat16)
    b2_p = jnp.zeros((1, o_pad), jnp.float32).at[:, :out_dim].set(
        b2.reshape(1, -1))

    # ---- Layer 2: out = A @ HW2 + b2 ; logp = log_softmax(out) ----
    logp_p, out_p = pl.pallas_call(
        functools.partial(_agg_logsoftmax_kernel, out_dim=out_dim),
        out_shape=(
            jax.ShapeDtypeStruct((n_pad, o_pad), jnp.float32),  # log_softmax
            jax.ShapeDtypeStruct((n_pad, o_pad), jnp.float32),  # raw output
        ),
        grid=grid,
        in_specs=[
            pl.BlockSpec((tm, tk), lambda i, k: (i, k)),       # A tile
            pl.BlockSpec((tk, o_pad), lambda i, k: (k, 0)),    # HW2 tile
            pl.BlockSpec((1, o_pad), lambda i, k: (0, 0)),     # b2
        ],
        out_specs=(
            pl.BlockSpec((tm, o_pad), lambda i, k: (i, 0)),
            pl.BlockSpec((tm, o_pad), lambda i, k: (i, 0)),
        ),
        scratch_shapes=[pltpu.VMEM((tm, o_pad), jnp.float32)],
        compiler_params=cp,
    )(a_p, hw2, b2_p)

    # Strip row/lane padding.
    return logp_p[:n, :out_dim], out_p[:n, :out_dim]


def normalized_adjacency(edge_index, num_nodes):
    """Dense D^{-1/2} (A + I) D^{-1/2}, matching PyG GCNConv defaults."""
    # TODO(synk): sparse/scatter message passing has no clean small Pallas
    # equivalent; the adjacency is densified in plain JAX here.
    src = edge_index[0]
    dst = edge_index[1]
    a = jnp.zeros((num_nodes, num_nodes), jnp.float32)
    a = a.at[dst, src].add(1.0)
    a = a + jnp.eye(num_nodes, dtype=jnp.float32)      # self loops
    deg = jnp.sum(a, axis=1)
    dinv = jnp.where(deg > 0.0, 1.0 / jnp.sqrt(deg), 0.0)
    return dinv[:, None] * a * dinv[None, :]


def glorot(key, shape):
    fan_in, fan_out = shape
    limit = jnp.sqrt(6.0 / (fan_in + fan_out))
    return jax.random.uniform(key, shape, jnp.float32, -limit, limit)


if __name__ == "__main__":
    # Small deterministic problem: 16 nodes, bidirectional ring graph.
    num_nodes = 16
    input_dim, hidden_dim, output_dim = 8, 32, 8

    key = jax.random.PRNGKey(0)
    k_x, k_w1, k_w2 = jax.random.split(key, 3)

    x = jax.random.normal(k_x, (num_nodes, input_dim), jnp.float32)

    idx = jnp.arange(num_nodes, dtype=jnp.int32)
    nxt = (idx + 1) % num_nodes
    edge_index = jnp.stack(
        [jnp.concatenate([idx, nxt]), jnp.concatenate([nxt, idx])], axis=0
    )

    # GCNConv-style init: glorot weights, zero bias.
    w1 = glorot(k_w1, (input_dim, hidden_dim))
    b1 = jnp.zeros((hidden_dim,), jnp.float32)
    w2 = glorot(k_w2, (hidden_dim, output_dim))
    b2 = jnp.zeros((output_dim,), jnp.float32)

    a_hat = normalized_adjacency(edge_index, num_nodes)

    logp, out = gcn_forward(a_hat, x, w1, b1, w2, b2)
    jax.block_until_ready((logp, out))

    # Sanity check against a plain-JAX f32 reference (bf16 MXU operands =>
    # looser tolerance than a pure-f32 kernel).
    h_ref = jnp.maximum(a_hat @ (x @ w1) + b1[None, :], 0.0)
    out_ref = a_hat @ (h_ref @ w2) + b2[None, :]
    logp_ref = jax.nn.log_softmax(out_ref, axis=1)
    assert jnp.allclose(out, out_ref, atol=3e-2), "output mismatch"
    assert jnp.allclose(logp, logp_ref, atol=3e-2), "log_softmax mismatch"

    print("KERNEL_OK")
</pallas_src>

<mosaic_0001>
module attributes {stable_mosaic.version = 11 : i64} {
  func.func @_agg_logsoftmax_kernel(%arg0: i32, %arg1: i32, %arg2: memref<128x128xbf16, #tpu.memory_space<vmem>>, %arg3: memref<128x128xbf16, #tpu.memory_space<vmem>>, %arg4: memref<1x128xf32, #tpu.memory_space<vmem>>, %arg5: memref<128x128xf32, #tpu.memory_space<vmem>>, %arg6: memref<128x128xf32, #tpu.memory_space<vmem>>, %arg7: memref<128x128xf32, #tpu.memory_space<vmem>>) attributes {dimension_semantics = [#tpu.dimension_semantics<parallel>, #tpu.dimension_semantics<arbitrary>], iteration_bounds = array<i64: 1, 1>, scalar_prefetch = 0 : i64, scratch_operands = 1 : i64, tpu.core_type = #tpu.core_type<tc>, window_params = [{transform_indices = @transform_0, window_bounds = array<i64: 128, 128>}, {transform_indices = @transform_1, window_bounds = array<i64: 128, 128>}, {pipeline_mode = #tpu.pipeline_mode<synchronous>, transform_indices = @transform_2, window_bounds = array<i64: 1, 128>}, {transform_indices = @transform_3, window_bounds = array<i64: 128, 128>}, {transform_indices = @transform_4, window_bounds = array<i64: 128, 128>}]} {
    %c0_i32 = arith.constant 0 : i32
    %0 = arith.cmpi eq, %arg1, %c0_i32 : i32
    %1 = arith.extui %0 : i1 to i32
    %c0_i32_0 = arith.constant 0 : i32
    %2 = arith.cmpi ne, %1, %c0_i32_0 : i32
    scf.if %2 {
      %cst_10 = arith.constant 0.000000e+00 : f32
      %12 = vector.broadcast %cst_10 : f32 to vector<128x128xf32>
      %c0_11 = arith.constant 0 : index
      %c0_12 = arith.constant 0 : index
      %13 = vector.load %arg7[%c0_11, %c0_12] : memref<128x128xf32, #tpu.memory_space<vmem>>, vector<128x128xf32>
      tpu.vector_store %arg7[%c0_11, %c0_12], %12 {strides = array<i32>} : memref<128x128xf32, #tpu.memory_space<vmem>>, vector<128x128xf32>,
    } else {
    }
    %c0 = arith.constant 0 : index
    %c0_1 = arith.constant 0 : index
    %3 = vector.load %arg7[%c0, %c0_1] : memref<128x128xf32, #tpu.memory_space<vmem>>, vector<128x128xf32>
    %c0_2 = arith.constant 0 : index
    %c0_3 = arith.constant 0 : index
    %4 = vector.load %arg2[%c0_2, %c0_3] : memref<128x128xbf16, #tpu.memory_space<vmem>>, vector<128x128xbf16>
    %c0_4 = arith.constant 0 : index
    %c0_5 = arith.constant 0 : index
    %5 = vector.load %arg3[%c0_4, %c0_5] : memref<128x128xbf16, #tpu.memory_space<vmem>>, vector<128x128xbf16>
    %cst = arith.constant dense<0.000000e+00> : vector<128x128xf32>
    %6 = tpu.matmul %4, %5, %cst {dimension_numbers = #tpu.dot_dimension_numbers<[1], [0], [0], [1], [0, 0, 1, 1], [], []>} : vector<128x128xbf16>, vector<128x128xbf16>, vector<128x128xf32> -> vector<128x128xf32>
    %7 = arith.addf %3, %6 : vector<128x128xf32>
    %c0_6 = arith.constant 0 : index
    %c0_7 = arith.constant 0 : index
    %8 = vector.load %arg7[%c0_6, %c0_7] : memref<128x128xf32, #tpu.memory_space<vmem>>, vector<128x128xf32>
    tpu.vector_store %arg7[%c0_6, %c0_7], %7 {strides = array<i32>} : memref<128x128xf32, #tpu.memory_space<vmem>>, vector<128x128xf32>,
    %c0_i32_8 = arith.constant 0 : i32
    %9 = arith.cmpi eq, %arg1, %c0_i32_8 : i32
    %10 = arith.extui %9 : i1 to i32
    %c0_i32_9 = arith.constant 0 : i32
    %11 = arith.cmpi ne, %10, %c0_i32_9 : i32
    scf.if %11 {
      %c0_10 = arith.constant 0 : index
      %c0_11 = arith.constant 0 : index
      %12 = vector.load %arg7[%c0_10, %c0_11] : memref<128x128xf32, #tpu.memory_space<vmem>>, vector<128x128xf32>
      %c0_12 = arith.constant 0 : index
      %c0_13 = arith.constant 0 : index
      %13 = vector.load %arg4[%c0_12, %c0_13] : memref<1x128xf32, #tpu.memory_space<vmem>>, vector<1x128xf32>
      %14 = vector.broadcast %13 : vector<1x128xf32> to vector<128x128xf32>
      %15 = arith.addf %12, %14 : vector<128x128xf32>
      %c0_14 = arith.constant 0 : index
      %c0_15 = arith.constant 0 : index
      %16 = vector.load %arg6[%c0_14, %c0_15] : memref<128x128xf32, #tpu.memory_space<vmem>>, vector<128x128xf32>
      tpu.vector_store %arg6[%c0_14, %c0_15], %15 {strides = array<i32>} : memref<128x128xf32, #tpu.memory_space<vmem>>, vector<128x128xf32>,
      %17 = tpu.iota {dimensions = array<i32: 1>} : vector<128x128xi32>
      %c8_i32 = arith.constant 8 : i32
      %18 = vector.broadcast %c8_i32 : i32 to vector<128x128xi32>
      %19 = arith.cmpi slt, %17, %18 : vector<128x128xi32>
      %cst_16 = arith.constant 0xFF800000 : f32
      %20 = vector.broadcast %cst_16 : f32 to vector<128x128xf32>
      %21 = arith.select %19, %15, %20 : vector<128x128xi1>, vector<128x128xf32>
      %cst_17 = arith.constant dense<0xFF800000> : vector<128xf32>
      %22 = vector.multi_reduction <maximumf>, %21, %cst_17 [1] : vector<128x128xf32> to vector<128xf32>
      %23 = vector.shape_cast %22 : vector<128xf32> to vector<128x1xf32>
      %24 = vector.broadcast %23 : vector<128x1xf32> to vector<128x128xf32>
      %25 = arith.subf %21, %24 : vector<128x128xf32>
      %26 = math.exp %25 : vector<128x128xf32>
      %cst_18 = arith.constant 0.000000e+00 : f32
      %27 = vector.broadcast %cst_18 : f32 to vector<128x128xf32>
      %28 = arith.select %19, %26, %27 : vector<128x128xi1>, vector<128x128xf32>
      %cst_19 = arith.constant dense<0.000000e+00> : vector<128xf32>
      %29 = vector.multi_reduction <add>, %28, %cst_19 [1] : vector<128x128xf32> to vector<128xf32>
      %30 = vector.shape_cast %29 : vector<128xf32> to vector<128x1xf32>
      %31 = math.log %30 : vector<128x1xf32>
      %32 = vector.broadcast %31 : vector<128x1xf32> to vector<128x128xf32>
      %33 = arith.subf %25, %32 : vector<128x128xf32>
      %c0_20 = arith.constant 0 : index
      %c0_21 = arith.constant 0 : index
      %34 = vector.load %arg5[%c0_20, %c0_21] : memref<128x128xf32, #tpu.memory_space<vmem>>, vector<128x128xf32>
      tpu.vector_store %arg5[%c0_20, %c0_21], %33 {strides = array<i32>} : memref<128x128xf32, #tpu.memory_space<vmem>>, vector<128x128xf32>,
    } else {
    }
    return
  }
  func.func @transform_0(%arg0: i32, %arg1: i32) -> (i32, i32) {
    %c0_i32 = arith.constant 0 : i32
    return %arg0, %arg1 : i32, i32
  }
  func.func @transform_1(%arg0: i32, %arg1: i32) -> (i32, i32) {
    %c0_i32 = arith.constant 0 : i32
    %c0_i32_0 = arith.constant 0 : i32
    return %arg1, %c0_i32 : i32, i32
  }
  func.func @transform_2(%arg0: i32, %arg1: i32) -> (i32, i32) {
    %c0_i32 = arith.constant 0 : i32
    %c0_i32_0 = arith.constant 0 : i32
    %c0_i32_1 = arith.constant 0 : i32
    return %c0_i32, %c0_i32_0 : i32, i32
  }
  func.func @transform_3(%arg0: i32, %arg1: i32) -> (i32, i32) {
    %c0_i32 = arith.constant 0 : i32
    %c0_i32_0 = arith.constant 0 : i32
    return %arg0, %c0_i32 : i32, i32
  }
  func.func @transform_4(%arg0: i32, %arg1: i32) -> (i32, i32) {
    %c0_i32 = arith.constant 0 : i32
    %c0_i32_0 = arith.constant 0 : i32
    return %arg0, %c0_i32 : i32, i32
  }
}

module attributes {stable_mosaic.version = 11 : i64} {
  func.func @_agg_relu_kernel(%arg0: i32, %arg1: i32, %arg2: memref<128x128xbf16, #tpu.memory_space<vmem>>, %arg3: memref<128x128xbf16, #tpu.memory_space<vmem>>, %arg4: memref<1x128xf32, #tpu.memory_space<vmem>>, %arg5: memref<128x128xbf16, #tpu.memory_space<vmem>>, %arg6: memref<128x128xf32, #tpu.memory_space<vmem>>) attributes {dimension_semantics = [#tpu.dimension_semantics<parallel>, #tpu.dimension_semantics<arbitrary>], iteration_bounds = array<i64: 1, 1>, scalar_prefetch = 0 : i64, scratch_operands = 1 : i64, tpu.core_type = #tpu.core_type<tc>, window_params = [{transform_indices = @transform_0, window_bounds = array<i64: 128, 128>}, {transform_indices = @transform_1, window_bounds = array<i64: 128, 128>}, {pipeline_mode = #tpu.pipeline_mode<synchronous>, transform_indices = @transform_2, window_bounds = array<i64: 1, 128>}, {transform_indices = @transform_3, window_bounds = array<i64: 128, 128>}]} {
    %c0_i32 = arith.constant 0 : i32
    %0 = arith.cmpi eq, %arg1, %c0_i32 : i32
    %1 = arith.extui %0 : i1 to i32
    %c0_i32_0 = arith.constant 0 : i32
    %2 = arith.cmpi ne, %1, %c0_i32_0 : i32
    scf.if %2 {
      %cst_10 = arith.constant 0.000000e+00 : f32
      %12 = vector.broadcast %cst_10 : f32 to vector<128x128xf32>
      %c0_11 = arith.constant 0 : index
      %c0_12 = arith.constant 0 : index
      %13 = vector.load %arg6[%c0_11, %c0_12] : memref<128x128xf32, #tpu.memory_space<vmem>>, vector<128x128xf32>
      tpu.vector_store %arg6[%c0_11, %c0_12], %12 {strides = array<i32>} : memref<128x128xf32, #tpu.memory_space<vmem>>, vector<128x128xf32>,
    } else {
    }
    %c0 = arith.constant 0 : index
    %c0_1 = arith.constant 0 : index
    %3 = vector.load %arg6[%c0, %c0_1] : memref<128x128xf32, #tpu.memory_space<vmem>>, vector<128x128xf32>
    %c0_2 = arith.constant 0 : index
    %c0_3 = arith.constant 0 : index
    %4 = vector.load %arg2[%c0_2, %c0_3] : memref<128x128xbf16, #tpu.memory_space<vmem>>, vector<128x128xbf16>
    %c0_4 = arith.constant 0 : index
    %c0_5 = arith.constant 0 : index
    %5 = vector.load %arg3[%c0_4, %c0_5] : memref<128x128xbf16, #tpu.memory_space<vmem>>, vector<128x128xbf16>
    %cst = arith.constant dense<0.000000e+00> : vector<128x128xf32>
    %6 = tpu.matmul %4, %5, %cst {dimension_numbers = #tpu.dot_dimension_numbers<[1], [0], [0], [1], [0, 0, 1, 1], [], []>} : vector<128x128xbf16>, vector<128x128xbf16>, vector<128x128xf32> -> vector<128x128xf32>
    %7 = arith.addf %3, %6 : vector<128x128xf32>
    %c0_6 = arith.constant 0 : index
    %c0_7 = arith.constant 0 : index
    %8 = vector.load %arg6[%c0_6, %c0_7] : memref<128x128xf32, #tpu.memory_space<vmem>>, vector<128x128xf32>
    tpu.vector_store %arg6[%c0_6, %c0_7], %7 {strides = array<i32>} : memref<128x128xf32, #tpu.memory_space<vmem>>, vector<128x128xf32>,
    %c0_i32_8 = arith.constant 0 : i32
    %9 = arith.cmpi eq, %arg1, %c0_i32_8 : i32
    %10 = arith.extui %9 : i1 to i32
    %c0_i32_9 = arith.constant 0 : i32
    %11 = arith.cmpi ne, %10, %c0_i32_9 : i32
    scf.if %11 {
      %c0_10 = arith.constant 0 : index
      %c0_11 = arith.constant 0 : index
      %12 = vector.load %arg6[%c0_10, %c0_11] : memref<128x128xf32, #tpu.memory_space<vmem>>, vector<128x128xf32>
      %c0_12 = arith.constant 0 : index
      %c0_13 = arith.constant 0 : index
      %13 = vector.load %arg4[%c0_12, %c0_13] : memref<1x128xf32, #tpu.memory_space<vmem>>, vector<1x128xf32>
      %14 = vector.broadcast %13 : vector<1x128xf32> to vector<128x128xf32>
      %15 = arith.addf %12, %14 : vector<128x128xf32>
      %cst_14 = arith.constant 0.000000e+00 : f32
      %16 = vector.broadcast %cst_14 : f32 to vector<128x128xf32>
      %17 = arith.maximumf %15, %16 : vector<128x128xf32>
      %18 = arith.truncf %17 : vector<128x128xf32> to vector<128x128xbf16>
      %c0_15 = arith.constant 0 : index
      %c0_16 = arith.constant 0 : index
      %19 = vector.load %arg5[%c0_15, %c0_16] : memref<128x128xbf16, #tpu.memory_space<vmem>>, vector<128x128xbf16>
      tpu.vector_store %arg5[%c0_15, %c0_16], %18 {strides = array<i32>} : memref<128x128xbf16, #tpu.memory_space<vmem>>, vector<128x128xbf16>,
    } else {
    }
    return
  }
  func.func @transform_0(%arg0: i32, %arg1: i32) -> (i32, i32) {
    %c0_i32 = arith.constant 0 : i32
    return %arg0, %arg1 : i32, i32
  }
  func.func @transform_1(%arg0: i32, %arg1: i32) -> (i32, i32) {
    %c0_i32 = arith.constant 0 : i32
    %c0_i32_0 = arith.constant 0 : i32
    return %arg1, %c0_i32 : i32, i32
  }
  func.func @transform_2(%arg0: i32, %arg1: i32) -> (i32, i32) {
    %c0_i32 = arith.constant 0 : i32
    %c0_i32_0 = arith.constant 0 : i32
    %c0_i32_1 = arith.constant 0 : i32
    return %c0_i32, %c0_i32_0 : i32, i32
  }
  func.func @transform_3(%arg0: i32, %arg1: i32) -> (i32, i32) {
    %c0_i32 = arith.constant 0 : i32
    %c0_i32_0 = arith.constant 0 : i32
    return %arg0, %c0_i32 : i32, i32
  }
}

</mosaic_0001>

<llo_original>
// kernel: gcn_forward.2
$region0: #{gcn_forward.2}
  #allocation0 [shape = 'u32[]', space=smem, size = 0x4, offset = 0x4, fixed_abs, tag = 'smem constant byte address 0x4 - core index']
  #allocation1 [shape = 'u32[144,128]{1,0:T(1,128)}', space=vmem, size = 0x12000, scoped, tag = 'internal scratch']
  #allocation2 [shape = 'f32[128,128]{1,0:T(8,128)}', space=vmem, size = 0x10000, scoped, tag = 'scratch operand']
  %s0 = inlined_call_operand.vmem [shape: bf16[128,128], index: 0, kind: input, shape index: {}]
  %s1 = inlined_call_operand.vmem [shape: bf16[128,128], index: 1, kind: input, shape index: {}]
  %s2 = inlined_call_operand.vmem [shape: f32[1,128], index: 2, kind: input, shape index: {}]
  %s3 = inlined_call_operand.vmem [shape: bf16[128,128], index: 3, kind: output, shape index: {}]
  %s4 = sld [smem:[#allocation0]]
  $region30: #{gcn_forward.2} parent=0
    _
  %s6 = ssub.s32 1, %s4
  %s7 = scalar_select 0, %s6, %s4
  // Predicated region
  $region2: #{gcn_forward.2} parent=0 // pred_check
    _
  $region3: #{gcn_forward.2} parent=0 // pred_check_branch
    %9 = sbr.rel (0) target = $region5
  $region4: #{gcn_forward.2} parent=0 // pred_region
    _
  $region5: #{gcn_forward.2} parent=0 // pred_fallthru
    _
  // Predicated region
  $region6: #{gcn_forward.2} parent=0 // pred_check
    _
  $region7: #{gcn_forward.2} parent=0 // pred_check_branch
    %11 = sbr.rel (0) target = $region9
  $region8: #{gcn_forward.2} parent=0 // pred_region
    _
  $region9: #{gcn_forward.2} parent=0 // pred_fallthru
    _
  // Predicated region
  $region10: #{gcn_forward.2} parent=0 // pred_check
    _
  $region11: #{gcn_forward.2} parent=0 // pred_check_branch
    %13 = sbr.rel (0) target = $region13
  $region12: #{gcn_forward.2} parent=0 // pred_region
    _
  $region13: #{gcn_forward.2} parent=0 // pred_fallthru
    _
  %p15 = scmp.eq.s32.totalorder 0, 0
  // Predicated region
  $region14: #{gcn_forward.2} parent=0 // pred_check
    %p16 = pneg %p15
  $region15: #{gcn_forward.2} parent=0 // pred_check_branch
    %18 = sbr.rel (%p16) target = $region17
  $region16: #{gcn_forward.2} parent=0 // pred_region
    %19 = vst [vmem:[#allocation2] sm:$0xff] 0.0
    %20 = vst [vmem:[#allocation2 + $0x8] sm:$0xff] 0.0
    %21 = vst [vmem:[#allocation2 + $0x10] sm:$0xff] 0.0
    %22 = vst [vmem:[#allocation2 + $0x18] sm:$0xff] 0.0
    %23 = vst [vmem:[#allocation2 + $0x20] sm:$0xff] 0.0
    %24 = vst [vmem:[#allocation2 + $0x28] sm:$0xff] 0.0
    %25 = vst [vmem:[#allocation2 + $0x30] sm:$0xff] 0.0
    %26 = vst [vmem:[#allocation2 + $0x38] sm:$0xff] 0.0
    %27 = vst [vmem:[#allocation2 + $0x40] sm:$0xff] 0.0
    %28 = vst [vmem:[#allocation2 + $0x48] sm:$0xff] 0.0
    %29 = vst [vmem:[#allocation2 + $0x50] sm:$0xff] 0.0
    %30 = vst [vmem:[#allocation2 + $0x58] sm:$0xff] 0.0
    %31 = vst [vmem:[#allocation2 + $0x60] sm:$0xff] 0.0
    %32 = vst [vmem:[#allocation2 + $0x68] sm:$0xff] 0.0
    %33 = vst [vmem:[#allocation2 + $0x70] sm:$0xff] 0.0
    %34 = vst [vmem:[#allocation2 + $0x78] sm:$0xff] 0.0
  $region17: #{gcn_forward.2} parent=0 // pred_fallthru
    _
  %v35 = vld [vmem:[#allocation2] sm:$0xff]
  %v36 = vld [vmem:[#allocation2 + $0x8] sm:$0xff]
  %v37 = vld [vmem:[#allocation2 + $0x10] sm:$0xff]
  %v38 = vld [vmem:[#allocation2 + $0x18] sm:$0xff]
  %v39 = vld [vmem:[#allocation2 + $0x20] sm:$0xff]
  %v40 = vld [vmem:[#allocation2 + $0x28] sm:$0xff]
  %v41 = vld [vmem:[#allocation2 + $0x30] sm:$0xff]
  %v42 = vld [vmem:[#allocation2 + $0x38] sm:$0xff]
  %v43 = vld [vmem:[#allocation2 + $0x40] sm:$0xff]
  %v44 = vld [vmem:[#allocation2 + $0x48] sm:$0xff]
  %v45 = vld [vmem:[#allocation2 + $0x50] sm:$0xff]
  %v46 = vld [vmem:[#allocation2 + $0x58] sm:$0xff]
  %v47 = vld [vmem:[#allocation2 + $0x60] sm:$0xff]
  %v48 = vld [vmem:[#allocation2 + $0x68] sm:$0xff]
  %v49 = vld [vmem:[#allocation2 + $0x70] sm:$0xff]
  %v50 = vld [vmem:[#allocation2 + $0x78] sm:$0xff]
  %v51 = vld [vmem:[%s0] sm:$0xf]
  %v52 = vld [vmem:[%s0 + $0x4] sm:$0xf]
  %v53 = vld [vmem:[%s0 + $0x8] sm:$0xf]
  %v54 = vld [vmem:[%s0 + $0xc] sm:$0xf]
  %v55 = vld [vmem:[%s0 + $0x10] sm:$0xf]
  %v56 = vld [vmem:[%s0 + $0x14] sm:$0xf]
  %v57 = vld [vmem:[%s0 + $0x18] sm:$0xf]
  %v58 = vld [vmem:[%s0 + $0x1c] sm:$0xf]
  %v59 = vld [vmem:[%s0 + $0x20] sm:$0xf]
  %v60 = vld [vmem:[%s0 + $0x24] sm:$0xf]
  %v61 = vld [vmem:[%s0 + $0x28] sm:$0xf]
  %v62 = vld [vmem:[%s0 + $0x2c] sm:$0xf]
  %v63 = vld [vmem:[%s0 + $0x30] sm:$0xf]
  %v64 = vld [vmem:[%s0 + $0x34] sm:$0xf]
  %v65 = vld [vmem:[%s0 + $0x38] sm:$0xf]
  %v66 = vld [vmem:[%s0 + $0x3c] sm:$0xf]
  %v67 = vld [vmem:[%s1] sm:$0xf]
  %v68 = vld [vmem:[%s1 + $0x4] sm:$0xf]
  %v69 = vld [vmem:[%s1 + $0x8] sm:$0xf]
  %v70 = vld [vmem:[%s1 + $0xc] sm:$0xf]
  %v71 = vld [vmem:[%s1 + $0x10] sm:$0xf]
  %v72 = vld [vmem:[%s1 + $0x14] sm:$0xf]
  %v73 = vld [vmem:[%s1 + $0x18] sm:$0xf]
  %v74 = vld [vmem:[%s1 + $0x1c] sm:$0xf]
  %v75 = vld [vmem:[%s1 + $0x20] sm:$0xf]
  %v76 = vld [vmem:[%s1 + $0x24] sm:$0xf]
  %v77 = vld [vmem:[%s1 + $0x28] sm:$0xf]
  %v78 = vld [vmem:[%s1 + $0x2c] sm:$0xf]
  %v79 = vld [vmem:[%s1 + $0x30] sm:$0xf]
  %v80 = vld [vmem:[%s1 + $0x34] sm:$0xf]
  %v81 = vld [vmem:[%s1 + $0x38] sm:$0xf]
  %v82 = vld [vmem:[%s1 + $0x3c] sm:$0xf]
  %v99 = vunpack.c.l.b16 %v51
  %v100 = vunpack.c.l.b16 %v52
  %v101 = vunpack.c.l.b16 %v53
  %v102 = vunpack.c.l.b16 %v54
  %v103 = vunpack.c.l.b16 %v55
  %v104 = vunpack.c.l.b16 %v56
  %v105 = vunpack.c.l.b16 %v57
  %v106 = vunpack.c.l.b16 %v58
  %v107 = vunpack.c.l.b16 %v59
  %v108 = vunpack.c.l.b16 %v60
  %v109 = vunpack.c.l.b16 %v61
  %v110 = vunpack.c.l.b16 %v62
  %v111 = vunpack.c.l.b16 %v63
  %v112 = vunpack.c.l.b16 %v64
  %v113 = vunpack.c.l.b16 %v65
  %v114 = vunpack.c.l.b16 %v66
  %v115 = vpack.c.b16 %v100, %v99
  %v116 = vpack.c.b16 %v102, %v101
  %v117 = vpack.c.b16 %v104, %v103
  %v118 = vpack.c.b16 %v106, %v105
  %v119 = vpack.c.b16 %v108, %v107
  %v120 = vpack.c.b16 %v110, %v109
  %v121 = vpack.c.b16 %v112, %v111
  %v122 = vpack.c.b16 %v114, %v113
  %v147 = vunpack.c.l.b16 %v67
  %v148 = vunpack.c.l.b16 %v68
  %v149 = vunpack.c.l.b16 %v69
  %v150 = vunpack.c.l.b16 %v70
  %v151 = vunpack.c.l.b16 %v71
  %v152 = vunpack.c.l.b16 %v72
  %v153 = vunpack.c.l.b16 %v73
  %v154 = vunpack.c.l.b16 %v74
  %v155 = vunpack.c.l.b16 %v75
  %v156 = vunpack.c.l.b16 %v76
  %v157 = vunpack.c.l.b16 %v77
  %v158 = vunpack.c.l.b16 %v78
  %v159 = vunpack.c.l.b16 %v79
  %v160 = vunpack.c.l.b16 %v80
  %v161 = vunpack.c.l.b16 %v81
  %v162 = vunpack.c.l.b16 %v82
  %v163 = vpack.c.b16 %v148, %v147
  %v164 = vpack.c.b16 %v150, %v149
  %v165 = vpack.c.b16 %v152, %v151
  %v166 = vpack.c.b16 %v154, %v153
  %v167 = vpack.c.b16 %v156, %v155
  %v168 = vpack.c.b16 %v158, %v157
  %v169 = vpack.c.b16 %v160, %v159
  %v170 = vpack.c.b16 %v162, %v161
  %179 = vmatprep.subr.bf16.mxu0 0
  %180 = vmatpush1.bf16.msra.mxu0 %v163
  %181 = vmatprep.subr.bf16.mxu0 0
  %182 = vmatpush1.bf16.msra.mxu0 %v164
  %183 = vmatprep.subr.bf16.mxu0 0
  %184 = vmatpush1.bf16.msra.mxu0 %v165
  %185 = vmatprep.subr.bf16.mxu0 0
  %186 = vmatpush1.bf16.msra.mxu0 %v166
  %187 = vmatprep.subr.bf16.mxu0 0
  %188 = vmatpush1.bf16.msra.mxu0 %v167
  %189 = vmatprep.subr.bf16.mxu0 0
  %190 = vmatpush1.bf16.msra.mxu0 %v168
  %191 = vmatprep.subr.bf16.mxu0 0
  %192 = vmatpush1.bf16.msra.mxu0 %v169
  %193 = vmatprep.subr.bf16.mxu0 0
  %194 = vmatpush1.bf16.msra.mxu0 %v170
  %195 = vmatprep.subr.bf16.mxu0 0
  %196 = vmatpush1.bf16.msra.mxu0 0
  %197 = vmatprep.subr.bf16.mxu0 0
  %198 = vmatpush1.bf16.msra.mxu0 0
  %199 = vmatprep.subr.bf16.mxu0 0
  %200 = vmatpush1.bf16.msra.mxu0 0
  %201 = vmatprep.subr.bf16.mxu0 0
  %202 = vmatpush1.bf16.msra.mxu0 0
  %203 = vmatprep.subr.bf16.mxu0 0
  %204 = vmatpush1.bf16.msra.mxu0 0
  %205 = vmatprep.subr.bf16.mxu0 0
  %206 = vmatpush1.bf16.msra.mxu0 0
  %207 = vmatprep.subr.bf16.mxu0 0
  %208 = vmatpush1.bf16.msra.mxu0 0
  %209 = vmatprep.subr.bf16.mxu0 0
  %210 = vmatpush1.bf16.msra.mxu0 0
  %211 = vmatprep.mubr.bf16.mxu0 0
  %212 = vmatmul.mubr.bf16.gmra.mrb[0].mxu0 %v115
  %v213 = vpop.f32.mrb[0].mxu0
  %v214 = vadd.f32 0.0, %v213
  %v215 = vpop.f32.mrb[0].mxu0
  %v216 = vpop.f32.mrb[0].mxu0
  %v217 = vadd.f32 0.0, %v216
  %v218 = vpop.f32.mrb[0].mxu0
  %219 = vmatprep.mubr.bf16.mxu0 0
  %220 = vmatmul.mubr.bf16.gmra.mrb[0].mxu0 %v116
  %v221 = vpop.f32.mrb[0].mxu0
  %v222 = vadd.f32 0.0, %v221
  %v223 = vpop.f32.mrb[0].mxu0
  %v224 = vpop.f32.mrb[0].mxu0
  %v225 = vadd.f32 0.0, %v224
  %v226 = vpop.f32.mrb[0].mxu0
  %227 = vmatprep.mubr.bf16.mxu0 0
  %228 = vmatmul.mubr.bf16.gmra.mrb[0].mxu0 %v117
  %v229 = vpop.f32.mrb[0].mxu0
  %v230 = vadd.f32 0.0, %v229
  %v231 = vpop.f32.mrb[0].mxu0
  %v232 = vpop.f32.mrb[0].mxu0
  %v233 = vadd.f32 0.0, %v232
  %v234 = vpop.f32.mrb[0].mxu0
  %235 = vmatprep.mubr.bf16.mxu0 0
  %236 = vmatmul.mubr.bf16.gmra.mrb[0].mxu0 %v118
  %v237 = vpop.f32.mrb[0].mxu0
  %v238 = vadd.f32 0.0, %v237
  %v239 = vpop.f32.mrb[0].mxu0
  %v240 = vpop.f32.mrb[0].mxu0
  %v241 = vadd.f32 0.0, %v240
  %v242 = vpop.f32.mrb[0].mxu0
  %243 = vmatprep.mubr.bf16.mxu0 0
  %244 = vmatmul.mubr.bf16.gmra.mrb[0].mxu0 %v119
  %v245 = vpop.f32.mrb[0].mxu0
  %v246 = vadd.f32 0.0, %v245
  %v247 = vpop.f32.mrb[0].mxu0
  %v248 = vpop.f32.mrb[0].mxu0
  %v249 = vadd.f32 0.0, %v248
  %v250 = vpop.f32.mrb[0].mxu0
  %251 = vmatprep.mubr.bf16.mxu0 0
  %252 = vmatmul.mubr.bf16.gmra.mrb[0].mxu0 %v120
  %v253 = vpop.f32.mrb[0].mxu0
  %v254 = vadd.f32 0.0, %v253
  %v255 = vpop.f32.mrb[0].mxu0
  %v256 = vpop.f32.mrb[0].mxu0
  %v257 = vadd.f32 0.0, %v256
  %v258 = vpop.f32.mrb[0].mxu0
  %259 = vmatprep.mubr.bf16.mxu0 0
  %260 = vmatmul.mubr.bf16.gmra.mrb[0].mxu0 %v121
  %v261 = vpop.f32.mrb[0].mxu0
  %v262 = vadd.f32 0.0, %v261
  %v263 = vpop.f32.mrb[0].mxu0
  %v264 = vpop.f32.mrb[0].mxu0
  %v265 = vadd.f32 0.0, %v264
  %v266 = vpop.f32.mrb[0].mxu0
  %267 = vmatprep.mubr.bf16.mxu0 0
  %268 = vmatmul.mubr.bf16.gmra.mrb[0].mxu0 %v122
  %v269 = vpop.f32.mrb[0].mxu0
  %v270 = vadd.f32 0.0, %v269
  %v271 = vpop.f32.mrb[0].mxu0
  %v272 = vpop.f32.mrb[0].mxu0
  %v273 = vadd.f32 0.0, %v272
  %v274 = vpop.f32.mrb[0].mxu0
  %275 = vdwg.mxu0
  %v276 = vadd.f32 %v35, %v214
  %v277 = vadd.f32 %v36, %v217
  %v278 = vadd.f32 %v37, %v222
  %v279 = vadd.f32 %v38, %v225
  %v280 = vadd.f32 %v39, %v230
  %v281 = vadd.f32 %v40, %v233
  %v282 = vadd.f32 %v41, %v238
  %v283 = vadd.f32 %v42, %v241
  %v284 = vadd.f32 %v43, %v246
  %v285 = vadd.f32 %v44, %v249
  %v286 = vadd.f32 %v45, %v254
  %v287 = vadd.f32 %v46, %v257
  %v288 = vadd.f32 %v47, %v262
  %v289 = vadd.f32 %v48, %v265
  %v290 = vadd.f32 %v49, %v270
  %v291 = vadd.f32 %v50, %v273
  %292 = vst [vmem:[#allocation2] sm:$0xff] %v276
  %293 = vst [vmem:[#allocation2 + $0x8] sm:$0xff] %v277
  %294 = vst [vmem:[#allocation2 + $0x10] sm:$0xff] %v278
  %295 = vst [vmem:[#allocation2 + $0x18] sm:$0xff] %v279
  %296 = vst [vmem:[#allocation2 + $0x20] sm:$0xff] %v280
  %297 = vst [vmem:[#allocation2 + $0x28] sm:$0xff] %v281
  %298 = vst [vmem:[#allocation2 + $0x30] sm:$0xff] %v282
  %299 = vst [vmem:[#allocation2 + $0x38] sm:$0xff] %v283
  %300 = vst [vmem:[#allocation2 + $0x40] sm:$0xff] %v284
  %301 = vst [vmem:[#allocation2 + $0x48] sm:$0xff] %v285
  %302 = vst [vmem:[#allocation2 + $0x50] sm:$0xff] %v286
  %303 = vst [vmem:[#allocation2 + $0x58] sm:$0xff] %v287
  %304 = vst [vmem:[#allocation2 + $0x60] sm:$0xff] %v288
  %305 = vst [vmem:[#allocation2 + $0x68] sm:$0xff] %v289
  %306 = vst [vmem:[#allocation2 + $0x70] sm:$0xff] %v290
  %307 = vst [vmem:[#allocation2 + $0x78] sm:$0xff] %v291
  // Predicated region
  $region18: #{gcn_forward.2} parent=0 // pred_check
    %p308 = pneg %p15
  $region19: #{gcn_forward.2} parent=0 // pred_check_branch
    %310 = sbr.rel (%p308) target = $region21
  $region20: #{gcn_forward.2} parent=0 // pred_region
    %v311 = vld [vmem:[#allocation2] sm:$0xff]
    %v312 = vld [vmem:[#allocation2 + $0x8] sm:$0xff]
    %v313 = vld [vmem:[#allocation2 + $0x10] sm:$0xff]
    %v314 = vld [vmem:[#allocation2 + $0x18] sm:$0xff]
    %v315 = vld [vmem:[#allocation2 + $0x20] sm:$0xff]
    %v316 = vld [vmem:[#allocation2 + $0x28] sm:$0xff]
    %v317 = vld [vmem:[#allocation2 + $0x30] sm:$0xff]
    %v318 = vld [vmem:[#allocation2 + $0x38] sm:$0xff]
    %v319 = vld [vmem:[#allocation2 + $0x40] sm:$0xff]
    %v320 = vld [vmem:[#allocation2 + $0x48] sm:$0xff]
    %v321 = vld [vmem:[#allocation2 + $0x50] sm:$0xff]
    %v322 = vld [vmem:[#allocation2 + $0x58] sm:$0xff]
    %v323 = vld [vmem:[#allocation2 + $0x60] sm:$0xff]
    %v324 = vld [vmem:[#allocation2 + $0x68] sm:$0xff]
    %v325 = vld [vmem:[#allocation2 + $0x70] sm:$0xff]
    %v326 = vld [vmem:[#allocation2 + $0x78] sm:$0xff]
    %v327 = vld [vmem:[%s2] sm:$0x1]
    %v329 = vlaneseq
    %v330 = vshrl.u32 %v329, 7
    %v331 = vsub.s32 0, %v330
    %v332 = vrot.slane %v327, %v331
    %v334 = vadd.f32 %v311, %v332
    %v335 = vadd.f32 %v312, %v332
    %v336 = vadd.f32 %v313, %v332
    %v337 = vadd.f32 %v314, %v332
    %v338 = vadd.f32 %v315, %v332
    %v339 = vadd.f32 %v316, %v332
    %v340 = vadd.f32 %v317, %v332
    %v341 = vadd.f32 %v318, %v332
    %v342 = vadd.f32 %v319, %v332
    %v343 = vadd.f32 %v320, %v332
    %v344 = vadd.f32 %v321, %v332
    %v345 = vadd.f32 %v322, %v332
    %v346 = vadd.f32 %v323, %v332
    %v347 = vadd.f32 %v324, %v332
    %v348 = vadd.f32 %v325, %v332
    %v349 = vadd.f32 %v326, %v332
    %v350 = vmax.f32 %v334, 0.0
    %v351 = vmax.f32 %v335, 0.0
    %v352 = vmax.f32 %v336, 0.0
    %v353 = vmax.f32 %v337, 0.0
    %v354 = vmax.f32 %v338, 0.0
    %v355 = vmax.f32 %v339, 0.0
    %v356 = vmax.f32 %v340, 0.0
    %v357 = vmax.f32 %v341, 0.0
    %v358 = vmax.f32 %v342, 0.0
    %v359 = vmax.f32 %v343, 0.0
    %v360 = vmax.f32 %v344, 0.0
    %v361 = vmax.f32 %v345, 0.0
    %v362 = vmax.f32 %v346, 0.0
    %v363 = vmax.f32 %v347, 0.0
    %v364 = vmax.f32 %v348, 0.0
    %v365 = vmax.f32 %v349, 0.0
    %v366 = vpack.c.bf16 %v351, %v350
    %v367 = vpack.c.bf16 %v353, %v352
    %v368 = vpack.c.bf16 %v355, %v354
    %v369 = vpack.c.bf16 %v357, %v356
    %v370 = vpack.c.bf16 %v359, %v358
    %v371 = vpack.c.bf16 %v361, %v360
    %v372 = vpack.c.bf16 %v363, %v362
    %v373 = vpack.c.bf16 %v365, %v364
    %374 = vst [vmem:[%s3] sm:$0xff] %v366
    %375 = vst [vmem:[%s3 + $0x8] sm:$0xff] %v367
    %376 = vst [vmem:[%s3 + $0x10] sm:$0xff] %v368
    %377 = vst [vmem:[%s3 + $0x18] sm:$0xff] %v369
    %378 = vst [vmem:[%s3 + $0x20] sm:$0xff] %v370
    %379 = vst [vmem:[%s3 + $0x28] sm:$0xff] %v371
    %380 = vst [vmem:[%s3 + $0x30] sm:$0xff] %v372
    %381 = vst [vmem:[%s3 + $0x38] sm:$0xff] %v373
  $region21: #{gcn_forward.2} parent=0 // pred_fallthru
    _
  // Predicated region
  $region22: #{gcn_forward.2} parent=0 // pred_check
    _
  $region23: #{gcn_forward.2} parent=0 // pred_check_branch
    %383 = sbr.rel (0) target = $region25
  $region24: #{gcn_forward.2} parent=0 // pred_region
    _
  $region25: #{gcn_forward.2} parent=0 // pred_fallthru
    _
  // Predicated region
  $region26: #{gcn_forward.2} parent=0 // pred_check
    _
  $region27: #{gcn_forward.2} parent=0 // pred_check_branch
    %385 = sbr.rel (0) target = $region29
  $region28: #{gcn_forward.2} parent=0 // pred_region
    _
  $region29: #{gcn_forward.2} parent=0 // pred_fallthru
    _

// kernel: gcn_forward.3
$region0: #{gcn_forward.3}
  #allocation0 [shape = 'u32[]', space=smem, size = 0x4, offset = 0x4, fixed_abs, tag = 'smem constant byte address 0x4 - core index']
  #allocation1 [shape = 'u32[144,128]{1,0:T(1,128)}', space=vmem, size = 0x12000, scoped, tag = 'internal scratch']
  #allocation2 [shape = 'f32[128,128]{1,0:T(8,128)}', space=vmem, size = 0x10000, scoped, tag = 'scratch operand']
  %s0 = inlined_call_operand.vmem [shape: bf16[128,128], index: 0, kind: input, shape index: {}]
  %s1 = inlined_call_operand.vmem [shape: bf16[128,128], index: 1, kind: input, shape index: {}]
  %s2 = inlined_call_operand.vmem [shape: f32[1,128], index: 2, kind: input, shape index: {}]
  %s3 = inlined_call_operand.vmem [shape: f32[128,128], index: 3, kind: output, shape index: {0}]
  %s4 = inlined_call_operand.vmem [shape: f32[128,128], index: 4, kind: output, shape index: {1}]
  %5 = xla_tuple %s3, %s4
  %s6 = sld [smem:[#allocation0]]
  $region38: #{gcn_forward.3} parent=0
    _
  %s8 = ssub.s32 1, %s6
  %s9 = scalar_select 0, %s8, %s6
  // Predicated region
  $region2: #{gcn_forward.3} parent=0 // pred_check
    _
  $region3: #{gcn_forward.3} parent=0 // pred_check_branch
    %11 = sbr.rel (0) target = $region5
  $region4: #{gcn_forward.3} parent=0 // pred_region
    _
  $region5: #{gcn_forward.3} parent=0 // pred_fallthru
    _
  // Predicated region
  $region6: #{gcn_forward.3} parent=0 // pred_check
    _
  $region7: #{gcn_forward.3} parent=0 // pred_check_branch
    %13 = sbr.rel (0) target = $region9
  $region8: #{gcn_forward.3} parent=0 // pred_region
    _
  $region9: #{gcn_forward.3} parent=0 // pred_fallthru
    _
  // Predicated region
  $region10: #{gcn_forward.3} parent=0 // pred_check
    _
  $region11: #{gcn_forward.3} parent=0 // pred_check_branch
    %15 = sbr.rel (0) target = $region13
  $region12: #{gcn_forward.3} parent=0 // pred_region
    _
  $region13: #{gcn_forward.3} parent=0 // pred_fallthru
    _
  %p17 = scmp.eq.s32.totalorder 0, 0
  // Predicated region
  $region14: #{gcn_forward.3} parent=0 // pred_check
    %p18 = pneg %p17
  $region15: #{gcn_forward.3} parent=0 // pred_check_branch
    %20 = sbr.rel (%p18) target = $region17
  $region16: #{gcn_forward.3} parent=0 // pred_region
    %21 = vst [vmem:[#allocation2] sm:$0xff] 0.0
    %22 = vst [vmem:[#allocation2 + $0x8] sm:$0xff] 0.0
    %23 = vst [vmem:[#allocation2 + $0x10] sm:$0xff] 0.0
    %24 = vst [vmem:[#allocation2 + $0x18] sm:$0xff] 0.0
    %25 = vst [vmem:[#allocation2 + $0x20] sm:$0xff] 0.0
    %26 = vst [vmem:[#allocation2 + $0x28] sm:$0xff] 0.0
    %27 = vst [vmem:[#allocation2 + $0x30] sm:$0xff] 0.0
    %28 = vst [vmem:[#allocation2 + $0x38] sm:$0xff] 0.0
    %29 = vst [vmem:[#allocation2 + $0x40] sm:$0xff] 0.0
    %30 = vst [vmem:[#allocation2 + $0x48] sm:$0xff] 0.0
    %31 = vst [vmem:[#allocation2 + $0x50] sm:$0xff] 0.0
    %32 = vst [vmem:[#allocation2 + $0x58] sm:$0xff] 0.0
    %33 = vst [vmem:[#allocation2 + $0x60] sm:$0xff] 0.0
    %34 = vst [vmem:[#allocation2 + $0x68] sm:$0xff] 0.0
    %35 = vst [vmem:[#allocation2 + $0x70] sm:$0xff] 0.0
    %36 = vst [vmem:[#allocation2 + $0x78] sm:$0xff] 0.0
  $region17: #{gcn_forward.3} parent=0 // pred_fallthru
    _
  %v37 = vld [vmem:[#allocation2] sm:$0xff]
  %v38 = vld [vmem:[#allocation2 + $0x8] sm:$0xff]
  %v39 = vld [vmem:[#allocation2 + $0x10] sm:$0xff]
  %v40 = vld [vmem:[#allocation2 + $0x18] sm:$0xff]
  %v41 = vld [vmem:[#allocation2 + $0x20] sm:$0xff]
  %v42 = vld [vmem:[#allocation2 + $0x28] sm:$0xff]
  %v43 = vld [vmem:[#allocation2 + $0x30] sm:$0xff]
  %v44 = vld [vmem:[#allocation2 + $0x38] sm:$0xff]
  %v45 = vld [vmem:[#allocation2 + $0x40] sm:$0xff]
  %v46 = vld [vmem:[#allocation2 + $0x48] sm:$0xff]
  %v47 = vld [vmem:[#allocation2 + $0x50] sm:$0xff]
  %v48 = vld [vmem:[#allocation2 + $0x58] sm:$0xff]
  %v49 = vld [vmem:[#allocation2 + $0x60] sm:$0xff]
  %v50 = vld [vmem:[#allocation2 + $0x68] sm:$0xff]
  %v51 = vld [vmem:[#allocation2 + $0x70] sm:$0xff]
  %v52 = vld [vmem:[#allocation2 + $0x78] sm:$0xff]
  %v53 = vld [vmem:[%s0] sm:$0xf]
  %v54 = vld [vmem:[%s0 + $0x4] sm:$0xf]
  %v55 = vld [vmem:[%s0 + $0x8] sm:$0xf]
  %v56 = vld [vmem:[%s0 + $0xc] sm:$0xf]
  %v57 = vld [vmem:[%s0 + $0x10] sm:$0xf]
  %v58 = vld [vmem:[%s0 + $0x14] sm:$0xf]
  %v59 = vld [vmem:[%s0 + $0x18] sm:$0xf]
  %v60 = vld [vmem:[%s0 + $0x1c] sm:$0xf]
  %v61 = vld [vmem:[%s0 + $0x20] sm:$0xf]
  %v62 = vld [vmem:[%s0 + $0x24] sm:$0xf]
  %v63 = vld [vmem:[%s0 + $0x28] sm:$0xf]
  %v64 = vld [vmem:[%s0 + $0x2c] sm:$0xf]
  %v65 = vld [vmem:[%s0 + $0x30] sm:$0xf]
  %v66 = vld [vmem:[%s0 + $0x34] sm:$0xf]
  %v67 = vld [vmem:[%s0 + $0x38] sm:$0xf]
  %v68 = vld [vmem:[%s0 + $0x3c] sm:$0xf]
  %v69 = vld [vmem:[%s1] sm:$0xf]
  %v70 = vld [vmem:[%s1 + $0x4] sm:$0xf]
  %v71 = vld [vmem:[%s1 + $0x8] sm:$0xf]
  %v72 = vld [vmem:[%s1 + $0xc] sm:$0xf]
  %v73 = vld [vmem:[%s1 + $0x10] sm:$0xf]
  %v74 = vld [vmem:[%s1 + $0x14] sm:$0xf]
  %v75 = vld [vmem:[%s1 + $0x18] sm:$0xf]
  %v76 = vld [vmem:[%s1 + $0x1c] sm:$0xf]
  %v77 = vld [vmem:[%s1 + $0x20] sm:$0xf]
  %v78 = vld [vmem:[%s1 + $0x24] sm:$0xf]
  %v79 = vld [vmem:[%s1 + $0x28] sm:$0xf]
  %v80 = vld [vmem:[%s1 + $0x2c] sm:$0xf]
  %v81 = vld [vmem:[%s1 + $0x30] sm:$0xf]
  %v82 = vld [vmem:[%s1 + $0x34] sm:$0xf]
  %v83 = vld [vmem:[%s1 + $0x38] sm:$0xf]
  %v84 = vld [vmem:[%s1 + $0x3c] sm:$0xf]
  %v101 = vunpack.c.l.b16 %v53
  %v102 = vunpack.c.l.b16 %v54
  %v103 = vunpack.c.l.b16 %v55
  %v104 = vunpack.c.l.b16 %v56
  %v105 = vunpack.c.l.b16 %v57
  %v106 = vunpack.c.l.b16 %v58
  %v107 = vunpack.c.l.b16 %v59
  %v108 = vunpack.c.l.b16 %v60
  %v109 = vunpack.c.l.b16 %v61
  %v110 = vunpack.c.l.b16 %v62
  %v111 = vunpack.c.l.b16 %v63
  %v112 = vunpack.c.l.b16 %v64
  %v113 = vunpack.c.l.b16 %v65
  %v114 = vunpack.c.l.b16 %v66
  %v115 = vunpack.c.l.b16 %v67
  %v116 = vunpack.c.l.b16 %v68
  %v117 = vpack.c.b16 %v102, %v101
  %v118 = vpack.c.b16 %v104, %v103
  %v119 = vpack.c.b16 %v106, %v105
  %v120 = vpack.c.b16 %v108, %v107
  %v121 = vpack.c.b16 %v110, %v109
  %v122 = vpack.c.b16 %v112, %v111
  %v123 = vpack.c.b16 %v114, %v113
  %v124 = vpack.c.b16 %v116, %v115
  %v149 = vunpack.c.l.b16 %v69
  %v150 = vunpack.c.l.b16 %v70
  %v151 = vunpack.c.l.b16 %v71
  %v152 = vunpack.c.l.b16 %v72
  %v153 = vunpack.c.l.b16 %v73
  %v154 = vunpack.c.l.b16 %v74
  %v155 = vunpack.c.l.b16 %v75
  %v156 = vunpack.c.l.b16 %v76
  %v157 = vunpack.c.l.b16 %v77
  %v158 = vunpack.c.l.b16 %v78
  %v159 = vunpack.c.l.b16 %v79
  %v160 = vunpack.c.l.b16 %v80
  %v161 = vunpack.c.l.b16 %v81
  %v162 = vunpack.c.l.b16 %v82
  %v163 = vunpack.c.l.b16 %v83
  %v164 = vunpack.c.l.b16 %v84
  %v165 = vpack.c.b16 %v150, %v149
  %v166 = vpack.c.b16 %v152, %v151
  %v167 = vpack.c.b16 %v154, %v153
  %v168 = vpack.c.b16 %v156, %v155
  %v169 = vpack.c.b16 %v158, %v157
  %v170 = vpack.c.b16 %v160, %v159
  %v171 = vpack.c.b16 %v162, %v161
  %v172 = vpack.c.b16 %v164, %v163
  %181 = vmatprep.subr.bf16.mxu0 0
  %182 = vmatpush1.bf16.msra.mxu0 %v165
  %183 = vmatprep.subr.bf16.mxu0 0
  %184 = vmatpush1.bf16.msra.mxu0 %v166
  %185 = vmatprep.subr.bf16.mxu0 0
  %186 = vmatpush1.bf16.msra.mxu0 %v167
  %187 = vmatprep.subr.bf16.mxu0 0
  %188 = vmatpush1.bf16.msra.mxu0 %v168
  %189 = vmatprep.subr.bf16.mxu0 0
  %190 = vmatpush1.bf16.msra.mxu0 %v169
  %191 = vmatprep.subr.bf16.mxu0 0
  %192 = vmatpush1.bf16.msra.mxu0 %v170
  %193 = vmatprep.subr.bf16.mxu0 0
  %194 = vmatpush1.bf16.msra.mxu0 %v171
  %195 = vmatprep.subr.bf16.mxu0 0
  %196 = vmatpush1.bf16.msra.mxu0 %v172
  %197 = vmatprep.subr.bf16.mxu0 0
  %198 = vmatpush1.bf16.msra.mxu0 0
  %199 = vmatprep.subr.bf16.mxu0 0
  %200 = vmatpush1.bf16.msra.mxu0 0
  %201 = vmatprep.subr.bf16.mxu0 0
  %202 = vmatpush1.bf16.msra.mxu0 0
  %203 = vmatprep.subr.bf16.mxu0 0
  %204 = vmatpush1.bf16.msra.mxu0 0
  %205 = vmatprep.subr.bf16.mxu0 0
  %206 = vmatpush1.bf16.msra.mxu0 0
  %207 = vmatprep.subr.bf16.mxu0 0
  %208 = vmatpush1.bf16.msra.mxu0 0
  %209 = vmatprep.subr.bf16.mxu0 0
  %210 = vmatpush1.bf16.msra.mxu0 0
  %211 = vmatprep.subr.bf16.mxu0 0
  %212 = vmatpush1.bf16.msra.mxu0 0
  %213 = vmatprep.mubr.bf16.mxu0 0
  %214 = vmatmul.mubr.bf16.gmra.mrb[0].mxu0 %v117
  %v215 = vpop.f32.mrb[0].mxu0
  %v216 = vadd.f32 0.0, %v215
  %v217 = vpop.f32.mrb[0].mxu0
  %v218 = vpop.f32.mrb[0].mxu0
  %v219 = vadd.f32 0.0, %v218
  %v220 = vpop.f32.mrb[0].mxu0
  %221 = vmatprep.mubr.bf16.mxu0 0
  %222 = vmatmul.mubr.bf16.gmra.mrb[0].mxu0 %v118
  %v223 = vpop.f32.mrb[0].mxu0
  %v224 = vadd.f32 0.0, %v223
  %v225 = vpop.f32.mrb[0].mxu0
  %v226 = vpop.f32.mrb[0].mxu0
  %v227 = vadd.f32 0.0, %v226
  %v228 = vpop.f32.mrb[0].mxu0
  %229 = vmatprep.mubr.bf16.mxu0 0
  %230 = vmatmul.mubr.bf16.gmra.mrb[0].mxu0 %v119
  %v231 = vpop.f32.mrb[0].mxu0
  %v232 = vadd.f32 0.0, %v231
  %v233 = vpop.f32.mrb[0].mxu0
  %v234 = vpop.f32.mrb[0].mxu0
  %v235 = vadd.f32 0.0, %v234
  %v236 = vpop.f32.mrb[0].mxu0
  %237 = vmatprep.mubr.bf16.mxu0 0
  %238 = vmatmul.mubr.bf16.gmra.mrb[0].mxu0 %v120
  %v239 = vpop.f32.mrb[0].mxu0
  %v240 = vadd.f32 0.0, %v239
  %v241 = vpop.f32.mrb[0].mxu0
  %v242 = vpop.f32.mrb[0].mxu0
  %v243 = vadd.f32 0.0, %v242
  %v244 = vpop.f32.mrb[0].mxu0
  %245 = vmatprep.mubr.bf16.mxu0 0
  %246 = vmatmul.mubr.bf16.gmra.mrb[0].mxu0 %v121
  %v247 = vpop.f32.mrb[0].mxu0
  %v248 = vadd.f32 0.0, %v247
  %v249 = vpop.f32.mrb[0].mxu0
  %v250 = vpop.f32.mrb[0].mxu0
  %v251 = vadd.f32 0.0, %v250
  %v252 = vpop.f32.mrb[0].mxu0
  %253 = vmatprep.mubr.bf16.mxu0 0
  %254 = vmatmul.mubr.bf16.gmra.mrb[0].mxu0 %v122
  %v255 = vpop.f32.mrb[0].mxu0
  %v256 = vadd.f32 0.0, %v255
  %v257 = vpop.f32.mrb[0].mxu0
  %v258 = vpop.f32.mrb[0].mxu0
  %v259 = vadd.f32 0.0, %v258
  %v260 = vpop.f32.mrb[0].mxu0
  %261 = vmatprep.mubr.bf16.mxu0 0
  %262 = vmatmul.mubr.bf16.gmra.mrb[0].mxu0 %v123
  %v263 = vpop.f32.mrb[0].mxu0
  %v264 = vadd.f32 0.0, %v263
  %v265 = vpop.f32.mrb[0].mxu0
  %v266 = vpop.f32.mrb[0].mxu0
  %v267 = vadd.f32 0.0, %v266
  %v268 = vpop.f32.mrb[0].mxu0
  %269 = vmatprep.mubr.bf16.mxu0 0
  %270 = vmatmul.mubr.bf16.gmra.mrb[0].mxu0 %v124
  %v271 = vpop.f32.mrb[0].mxu0
  %v272 = vadd.f32 0.0, %v271
  %v273 = vpop.f32.mrb[0].mxu0
  %v274 = vpop.f32.mrb[0].mxu0
  %v275 = vadd.f32 0.0, %v274
  %v276 = vpop.f32.mrb[0].mxu0
  %277 = vdwg.mxu0
  %v278 = vadd.f32 %v37, %v216
  %v279 = vadd.f32 %v38, %v219
  %v280 = vadd.f32 %v39, %v224
  %v281 = vadd.f32 %v40, %v227
  %v282 = vadd.f32 %v41, %v232
  %v283 = vadd.f32 %v42, %v235
  %v284 = vadd.f32 %v43, %v240
  %v285 = vadd.f32 %v44, %v243
  %v286 = vadd.f32 %v45, %v248
  %v287 = vadd.f32 %v46, %v251
  %v288 = vadd.f32 %v47, %v256
  %v289 = vadd.f32 %v48, %v259
  %v290 = vadd.f32 %v49, %v264
  %v291 = vadd.f32 %v50, %v267
  %v292 = vadd.f32 %v51, %v272
  %v293 = vadd.f32 %v52, %v275
  %294 = vst [vmem:[#allocation2] sm:$0xff] %v278
  %295 = vst [vmem:[#allocation2 + $0x8] sm:$0xff] %v279
  %296 = vst [vmem:[#allocation2 + $0x10] sm:$0xff] %v280
  %297 = vst [vmem:[#allocation2 + $0x18] sm:$0xff] %v281
  %298 = vst [vmem:[#allocation2 + $0x20] sm:$0xff] %v282
  %299 = vst [vmem:[#allocation2 + $0x28] sm:$0xff] %v283
  %300 = vst [vmem:[#allocation2 + $0x30] sm:$0xff] %v284
  %301 = vst [vmem:[#allocation2 + $0x38] sm:$0xff] %v285
  %302 = vst [vmem:[#allocation2 + $0x40] sm:$0xff] %v286
  %303 = vst [vmem:[#allocation2 + $0x48] sm:$0xff] %v287
  %304 = vst [vmem:[#allocation2 + $0x50] sm:$0xff] %v288
  %305 = vst [vmem:[#allocation2 + $0x58] sm:$0xff] %v289
  %306 = vst [vmem:[#allocation2 + $0x60] sm:$0xff] %v290
  %307 = vst [vmem:[#allocation2 + $0x68] sm:$0xff] %v291
  %308 = vst [vmem:[#allocation2 + $0x70] sm:$0xff] %v292
  %309 = vst [vmem:[#allocation2 + $0x78] sm:$0xff] %v293
  // Predicated region
  $region18: #{gcn_forward.3} parent=0 // pred_check
    %p310 = pneg %p17
  $region19: #{gcn_forward.3} parent=0 // pred_check_branch
    %312 = sbr.rel (%p310) target = $region21
  $region20: #{gcn_forward.3} parent=0 // pred_region
    %v313 = vld [vmem:[#allocation2] sm:$0xff]
    %v314 = vld [vmem:[#allocation2 + $0x8] sm:$0xff]
    %v315 = vld [vmem:[#allocation2 + $0x10] sm:$0xff]
    %v316 = vld [vmem:[#allocation2 + $0x18] sm:$0xff]
    %v317 = vld [vmem:[#allocation2 + $0x20] sm:$0xff]
    %v318 = vld [vmem:[#allocation2 + $0x28] sm:$0xff]
    %v319 = vld [vmem:[#allocation2 + $0x30] sm:$0xff]
    %v320 = vld [vmem:[#allocation2 + $0x38] sm:$0xff]
    %v321 = vld [vmem:[#allocation2 + $0x40] sm:$0xff]
    %v322 = vld [vmem:[#allocation2 + $0x48] sm:$0xff]
    %v323 = vld [vmem:[#allocation2 + $0x50] sm:$0xff]
    %v324 = vld [vmem:[#allocation2 + $0x58] sm:$0xff]
    %v325 = vld [vmem:[#allocation2 + $0x60] sm:$0xff]
    %v326 = vld [vmem:[#allocation2 + $0x68] sm:$0xff]
    %v327 = vld [vmem:[#allocation2 + $0x70] sm:$0xff]
    %v328 = vld [vmem:[#allocation2 + $0x78] sm:$0xff]
    %v329 = vld [vmem:[%s2] sm:$0x1]
    %v331 = vlaneseq
    %v332 = vshrl.u32 %v331, 7
    %v333 = vsub.s32 0, %v332
    %v334 = vrot.slane %v329, %v333
    %v336 = vadd.f32 %v313, %v334
    %v337 = vadd.f32 %v314, %v334
    %v338 = vadd.f32 %v315, %v334
    %v339 = vadd.f32 %v316, %v334
    %v340 = vadd.f32 %v317, %v334
    %v341 = vadd.f32 %v318, %v334
    %v342 = vadd.f32 %v319, %v334
    %v343 = vadd.f32 %v320, %v334
    %v344 = vadd.f32 %v321, %v334
    %v345 = vadd.f32 %v322, %v334
    %v346 = vadd.f32 %v323, %v334
    %v347 = vadd.f32 %v324, %v334
    %v348 = vadd.f32 %v325, %v334
    %v349 = vadd.f32 %v326, %v334
    %v350 = vadd.f32 %v327, %v334
    %v351 = vadd.f32 %v328, %v334
    %352 = vst [vmem:[%s4] sm:$0xff] %v336
    %353 = vst [vmem:[%s4 + $0x8] sm:$0xff] %v337
    %354 = vst [vmem:[%s4 + $0x10] sm:$0xff] %v338
    %355 = vst [vmem:[%s4 + $0x18] sm:$0xff] %v339
    %356 = vst [vmem:[%s4 + $0x20] sm:$0xff] %v340
    %357 = vst [vmem:[%s4 + $0x28] sm:$0xff] %v341
    %358 = vst [vmem:[%s4 + $0x30] sm:$0xff] %v342
    %359 = vst [vmem:[%s4 + $0x38] sm:$0xff] %v343
    %360 = vst [vmem:[%s4 + $0x40] sm:$0xff] %v344
    %361 = vst [vmem:[%s4 + $0x48] sm:$0xff] %v345
    %362 = vst [vmem:[%s4 + $0x50] sm:$0xff] %v346
    %363 = vst [vmem:[%s4 + $0x58] sm:$0xff] %v347
    %364 = vst [vmem:[%s4 + $0x60] sm:$0xff] %v348
    %365 = vst [vmem:[%s4 + $0x68] sm:$0xff] %v349
    %366 = vst [vmem:[%s4 + $0x70] sm:$0xff] %v350
    %367 = vst [vmem:[%s4 + $0x78] sm:$0xff] %v351
    %v368 = vlaneseq
    %v369 = vand.u32 %v368, 127
    %vm370 = vcmp.lt.s32.totalorder %v369, 8
    %v371 = vsel %vm370, %v336, -inf
    %v372 = vsel %vm370, %v337, -inf
    %v373 = vsel %vm370, %v338, -inf
    %v374 = vsel %vm370, %v339, -inf
    %v375 = vsel %vm370, %v340, -inf
    %v376 = vsel %vm370, %v341, -inf
    %v377 = vsel %vm370, %v342, -inf
    %v378 = vsel %vm370, %v343, -inf
    %v379 = vsel %vm370, %v344, -inf
    %v380 = vsel %vm370, %v345, -inf
    %v381 = vsel %vm370, %v346, -inf
    %v382 = vsel %vm370, %v347, -inf
    %v383 = vsel %vm370, %v348, -inf
    %v384 = vsel %vm370, %v349, -inf
    %v385 = vsel %vm370, %v350, -inf
    %v386 = vsel %vm370, %v351, -inf
    %387 = vmax.xlane.f32.xlu0 %v371
    %v388 = vpop.xlane.xlu0 %387
    %389 = vmax.xlane.f32.xlu0 %v372
    %v390 = vpop.xlane.xlu0 %389
    %391 = vmax.xlane.f32.xlu0 %v373
    %v392 = vpop.xlane.xlu0 %391
    %393 = vmax.xlane.f32.xlu0 %v374
    %v394 = vpop.xlane.xlu0 %393
    %395 = vmax.xlane.f32.xlu0 %v375
    %v396 = vpop.xlane.xlu0 %395
    %397 = vmax.xlane.f32.xlu0 %v376
    %v398 = vpop.xlane.xlu0 %397
    %399 = vmax.xlane.f32.xlu0 %v377
    %v400 = vpop.xlane.xlu0 %399
    %401 = vmax.xlane.f32.xlu0 %v378
    %v402 = vpop.xlane.xlu0 %401
    %403 = vmax.xlane.f32.xlu0 %v379
    %v404 = vpop.xlane.xlu0 %403
    %405 = vmax.xlane.f32.xlu0 %v380
    %v406 = vpop.xlane.xlu0 %405
    %407 = vmax.xlane.f32.xlu0 %v381
    %v408 = vpop.xlane.xlu0 %407
    %409 = vmax.xlane.f32.xlu0 %v382
    %v410 = vpop.xlane.xlu0 %409
    %411 = vmax.xlane.f32.xlu0 %v383
    %v412 = vpop.xlane.xlu0 %411
    %413 = vmax.xlane.f32.xlu0 %v384
    %v414 = vpop.xlane.xlu0 %413
    %415 = vmax.xlane.f32.xlu0 %v385
    %v416 = vpop.xlane.xlu0 %415
    %417 = vmax.xlane.f32.xlu0 %v386
    %v418 = vpop.xlane.xlu0 %417
    %v419 = vsub.f32 %v371, %v388
    %v420 = vsub.f32 %v372, %v390
    %v421 = vsub.f32 %v373, %v392
    %v422 = vsub.f32 %v374, %v394
    %v423 = vsub.f32 %v375, %v396
    %v424 = vsub.f32 %v376, %v398
    %v425 = vsub.f32 %v377, %v400
    %v426 = vsub.f32 %v378, %v402
    %v427 = vsub.f32 %v379, %v404
    %v428 = vsub.f32 %v380, %v406
    %v429 = vsub.f32 %v381, %v408
    %v430 = vsub.f32 %v382, %v410
    %v431 = vsub.f32 %v383, %v412
    %v432 = vsub.f32 %v384, %v414
    %v433 = vsub.f32 %v385, %v416
    %v434 = vsub.f32 %v386, %v418
    %v435 = vmul.f32 %v419, 1.442695
    %v436 = vpow.pop %v435
    %v437 = vmul.f32 %v420, 1.442695
    %v438 = vpow.pop %v437
    %v439 = vmul.f32 %v421, 1.442695
    %v440 = vpow.pop %v439
    %v441 = vmul.f32 %v422, 1.442695
    %v442 = vpow.pop %v441
    %v443 = vmul.f32 %v423, 1.442695
    %v444 = vpow.pop %v443
    %v445 = vmul.f32 %v424, 1.442695
    %v446 = vpow.pop %v445
    %v447 = vmul.f32 %v425, 1.442695
    %v448 = vpow.pop %v447
    %v449 = vmul.f32 %v426, 1.442695
    %v450 = vpow.pop %v449
    %v451 = vmul.f32 %v427, 1.442695
    %v452 = vpow.pop %v451
    %v453 = vmul.f32 %v428, 1.442695
    %v454 = vpow.pop %v453
    %v455 = vmul.f32 %v429, 1.442695
    %v456 = vpow.pop %v455
    %v457 = vmul.f32 %v430, 1.442695
    %v458 = vpow.pop %v457
    %v459 = vmul.f32 %v431, 1.442695
    %v460 = vpow.pop %v459
    %v461 = vmul.f32 %v432, 1.442695
    %v462 = vpow.pop %v461
    %v463 = vmul.f32 %v433, 1.442695
    %v464 = vpow.pop %v463
    %v465 = vmul.f32 %v434, 1.442695
    %v466 = vpow.pop %v465
    %v467 = vsel %vm370, %v436, 0.0
    %v468 = vsel %vm370, %v438, 0.0
    %v469 = vsel %vm370, %v440, 0.0
    %v470 = vsel %vm370, %v442, 0.0
    %v471 = vsel %vm370, %v444, 0.0
    %v472 = vsel %vm370, %v446, 0.0
    %v473 = vsel %vm370, %v448, 0.0
    %v474 = vsel %vm370, %v450, 0.0
    %v475 = vsel %vm370, %v452, 0.0
    %v476 = vsel %vm370, %v454, 0.0
    %v477 = vsel %vm370, %v456, 0.0
    %v478 = vsel %vm370, %v458, 0.0
    %v479 = vsel %vm370, %v460, 0.0
    %v480 = vsel %vm370, %v462, 0.0
    %v481 = vsel %vm370, %v464, 0.0
    %v482 = vsel %vm370, %v466, 0.0
    %483 = vadd.xlane.f32.xlu0 %v467
    %v484 = vpop.xlane.xlu0 %483
    %485 = vadd.xlane.f32.xlu0 %v468
    %v486 = vpop.xlane.xlu0 %485
    %487 = vadd.xlane.f32.xlu0 %v469
    %v488 = vpop.xlane.xlu0 %487
    %489 = vadd.xlane.f32.xlu0 %v470
    %v490 = vpop.xlane.xlu0 %489
    %491 = vadd.xlane.f32.xlu0 %v471
    %v492 = vpop.xlane.xlu0 %491
    %493 = vadd.xlane.f32.xlu0 %v472
    %v494 = vpop.xlane.xlu0 %493
    %495 = vadd.xlane.f32.xlu0 %v473
    %v496 = vpop.xlane.xlu0 %495
    %497 = vadd.xlane.f32.xlu0 %v474
    %v498 = vpop.xlane.xlu0 %497
    %499 = vadd.xlane.f32.xlu0 %v475
    %v500 = vpop.xlane.xlu0 %499
    %501 = vadd.xlane.f32.xlu0 %v476
    %v502 = vpop.xlane.xlu0 %501
    %503 = vadd.xlane.f32.xlu0 %v477
    %v504 = vpop.xlane.xlu0 %503
    %505 = vadd.xlane.f32.xlu0 %v478
    %v506 = vpop.xlane.xlu0 %505
    %507 = vadd.xlane.f32.xlu0 %v479
    %v508 = vpop.xlane.xlu0 %507
    %509 = vadd.xlane.f32.xlu0 %v480
    %v510 = vpop.xlane.xlu0 %509
    %511 = vadd.xlane.f32.xlu0 %v481
    %v512 = vpop.xlane.xlu0 %511
    %513 = vadd.xlane.f32.xlu0 %v482
    %v514 = vpop.xlane.xlu0 %513
    %v515 = vlog2.pop %v484
    %v516 = vmul.f32 %v515, 0.6931472
    %v517 = vlog2.pop %v486
    %v518 = vmul.f32 %v517, 0.6931472
    %v519 = vlog2.pop %v488
    %v520 = vmul.f32 %v519, 0.6931472
    %v521 = vlog2.pop %v490
    %v522 = vmul.f32 %v521, 0.6931472
    %v523 = vlog2.pop %v492
    %v524 = vmul.f32 %v523, 0.6931472
    %v525 = vlog2.pop %v494
    %v526 = vmul.f32 %v525, 0.6931472
    %v527 = vlog2.pop %v496
    %v528 = vmul.f32 %v527, 0.6931472
    %v529 = vlog2.pop %v498
    %v530 = vmul.f32 %v529, 0.6931472
    %v531 = vlog2.pop %v500
    %v532 = vmul.f32 %v531, 0.6931472
    %v533 = vlog2.pop %v502
    %v534 = vmul.f32 %v533, 0.6931472
    %v535 = vlog2.pop %v504
    %v536 = vmul.f32 %v535, 0.6931472
    %v537 = vlog2.pop %v506
    %v538 = vmul.f32 %v537, 0.6931472
    %v539 = vlog2.pop %v508
    %v540 = vmul.f32 %v539, 0.6931472
    %v541 = vlog2.pop %v510
    %v542 = vmul.f32 %v541, 0.6931472
    %v543 = vlog2.pop %v512
    %v544 = vmul.f32 %v543, 0.6931472
    %v545 = vlog2.pop %v514
    %v546 = vmul.f32 %v545, 0.6931472
    %v547 = vsub.f32 %v419, %v516
    %v548 = vsub.f32 %v420, %v518
    %v549 = vsub.f32 %v421, %v520
    %v550 = vsub.f32 %v422, %v522
    %v551 = vsub.f32 %v423, %v524
    %v552 = vsub.f32 %v424, %v526
    %v553 = vsub.f32 %v425, %v528
    %v554 = vsub.f32 %v426, %v530
    %v555 = vsub.f32 %v427, %v532
    %v556 = vsub.f32 %v428, %v534
    %v557 = vsub.f32 %v429, %v536
    %v558 = vsub.f32 %v430, %v538
    %v559 = vsub.f32 %v431, %v540
    %v560 = vsub.f32 %v432, %v542
    %v561 = vsub.f32 %v433, %v544
    %v562 = vsub.f32 %v434, %v546
    %563 = vst [vmem:[%s3] sm:$0xff] %v547
    %564 = vst [vmem:[%s3 + $0x8] sm:$0xff] %v548
    %565 = vst [vmem:[%s3 + $0x10] sm:$0xff] %v549
    %566 = vst [vmem:[%s3 + $0x18] sm:$0xff] %v550
    %567 = vst [vmem:[%s3 + $0x20] sm:$0xff] %v551
    %568 = vst [vmem:[%s3 + $0x28] sm:$0xff] %v552
    %569 = vst [vmem:[%s3 + $0x30] sm:$0xff] %v553
    %570 = vst [vmem:[%s3 + $0x38] sm:$0xff] %v554
    %571 = vst [vmem:[%s3 + $0x40] sm:$0xff] %v555
    %572 = vst [vmem:[%s3 + $0x48] sm:$0xff] %v556
    %573 = vst [vmem:[%s3 + $0x50] sm:$0xff] %v557
    %574 = vst [vmem:[%s3 + $0x58] sm:$0xff] %v558
    %575 = vst [vmem:[%s3 + $0x60] sm:$0xff] %v559
    %576 = vst [vmem:[%s3 + $0x68] sm:$0xff] %v560
    %577 = vst [vmem:[%s3 + $0x70] sm:$0xff] %v561
    %578 = vst [vmem:[%s3 + $0x78] sm:$0xff] %v562
  $region21: #{gcn_forward.3} parent=0 // pred_fallthru
    _
  // Predicated region
  $region22: #{gcn_forward.3} parent=0 // pred_check
    _
  $region23: #{gcn_forward.3} parent=0 // pred_check_branch
    %580 = sbr.rel (0) target = $region25
  $region24: #{gcn_forward.3} parent=0 // pred_region
    _
  $region25: #{gcn_forward.3} parent=0 // pred_fallthru
    _
  // Predicated region
  $region26: #{gcn_forward.3} parent=0 // pred_check
    _
  $region27: #{gcn_forward.3} parent=0 // pred_check_branch
    %582 = sbr.rel (0) target = $region29
  $region28: #{gcn_forward.3} parent=0 // pred_region
    _
  $region29: #{gcn_forward.3} parent=0 // pred_fallthru
    _
  // Predicated region
  $region30: #{gcn_forward.3} parent=0 // pred_check
    _
  $region31: #{gcn_forward.3} parent=0 // pred_check_branch
    %584 = sbr.rel (0) target = $region33
  $region32: #{gcn_forward.3} parent=0 // pred_region
    _
  $region33: #{gcn_forward.3} parent=0 // pred_fallthru
    _
  // Predicated region
  $region34: #{gcn_forward.3} parent=0 // pred_check
    _
  $region35: #{gcn_forward.3} parent=0 // pred_check_branch
    %586 = sbr.rel (0) target = $region37
  $region36: #{gcn_forward.3} parent=0 // pred_region
    _
  $region37: #{gcn_forward.3} parent=0 // pred_fallthru
    _

</llo_original>
